<compile_context>
chip_gen: v7x
topology: tpu7x:2x2x1
jax: 0.10.0
libtpu: 0.0.40
codegen_flags: <defaults>
</compile_context>

<pallas_src>
import functools

import jax
import jax.numpy as jnp
from jax.experimental import pallas as pl
from jax.experimental.pallas import tpu as pltpu


# ---------------------------------------------------------------------------
# Kernels
# ---------------------------------------------------------------------------
def _add_pos_kernel(x_ref, pos_ref, o_ref):
    # x_ref: (TILE_B, TILE_S, D) VMEM, pos_ref: (TILE_S, D) VMEM
    # Broadcast-add the learned positional tile over the batch tile, in x's dtype.
    pos = pos_ref[...].astype(x_ref.dtype)
    o_ref[...] = x_ref[...] + pos[None, :, :]


def _add_pos_dropout_kernel(x_ref, pos_ref, bits_ref, o_ref, *, threshold, scale):
    # Training path: add positional tile, then inverted dropout.
    # bits_ref holds i.i.d. uniform integers in [0, 2^24); keep iff bits >= threshold
    # (threshold = round(rate * 2^24)), scale kept values by 1/(1-rate).
    y = x_ref[...] + pos_ref[...].astype(x_ref.dtype)[None, :, :]
    keep = bits_ref[...] >= threshold
    o_ref[...] = jnp.where(keep, y * jnp.asarray(scale, dtype=y.dtype),
                           jnp.zeros_like(y))


# ---------------------------------------------------------------------------
# Tiling
# ---------------------------------------------------------------------------
def _choose_tiles(B, S, D, itemsize, target_bytes=1 << 20):
    """Pick (TILE_B, TILE_S) so one x block is ~target_bytes (pipeline-friendly,
    well under the 16/32 MiB scoped-VMEM defaults even with double buffering)."""
    per_row = max(1, D * itemsize)
    rows = max(1, target_bytes // per_row)
    if rows >= S:
        tile_s = S
        tile_b = int(max(1, min(B, target_bytes // max(1, S * per_row))))
    else:
        # keep the sublane axis of the block 8-aligned
        tile_s = int(max(8, (rows // 8) * 8))
        tile_b = 1
    return tile_b, tile_s


# ---------------------------------------------------------------------------
# Wrapper
# ---------------------------------------------------------------------------
def learned_positional_encoding_1d(x, pos_table, *, dropout_rate=0.1,
                                   training=False, rng_key=None,
                                   donate_x=False):
    """x: (B, S, D); pos_table: (max_len, D). Returns (B, S, D)."""
    B, S, D = x.shape
    max_len, d_model = pos_table.shape
    assert d_model == D and max_len >= S

    tile_b, tile_s = _choose_tiles(B, S, D, jnp.dtype(x.dtype).itemsize)

    # Let the BlockSpec select rows [0, S) of the table for free.  Only fall back
    # to a tiny wrapper slice when the tile can't satisfy the (8, 128) block rule.
    if tile_s % 8 == 0 or tile_s == max_len:
        pos_arr = pos_table
    else:
        pos_arr = pos_table[:S]

    grid = (pl.cdiv(S, tile_s), pl.cdiv(B, tile_b))
    x_spec = pl.BlockSpec((tile_b, tile_s, D), lambda s, b: (b, s, 0))
    pos_spec = pl.BlockSpec((tile_s, D), lambda s, b: (s, 0))  # batch-independent
    out_spec = pl.BlockSpec((tile_b, tile_s, D), lambda s, b: (b, s, 0))
    compiler_params = pltpu.CompilerParams(
        dimension_semantics=("parallel", "parallel"),
        vmem_limit_bytes=32 * 1024 * 1024,
    )
    out_shape = jax.ShapeDtypeStruct((B, S, D), x.dtype)

    if (not training) or dropout_rate <= 0.0:
        # Inference mode: dropout is the identity.
        return pl.pallas_call(
            _add_pos_kernel,
            out_shape=out_shape,
            grid=grid,
            in_specs=[x_spec, pos_spec],
            out_specs=out_spec,
            compiler_params=compiler_params,
            input_output_aliases={0: 0} if donate_x else {},
        )(x, pos_arr)

    if dropout_rate >= 1.0:
        return jnp.zeros((B, S, D), x.dtype)

    if rng_key is None:
        rng_key = jax.random.PRNGKey(0)
    # TODO(synk): bits come from jax.random host-side because pltpu.prng_seed /
    # prng_random_bits do not lower in the generic interpret harness; a TPU-only
    # build can move to per-tile pltpu.prng_random_bits (seeded from program_id)
    # to save one B*S*D int32 read of HBM bandwidth.
    bits = jax.random.randint(rng_key, (B, S, D), 0, 1 << 24, dtype=jnp.int32)
    threshold = int(round(float(dropout_rate) * (1 << 24)))
    scale = 1.0 / (1.0 - float(dropout_rate))
    kernel = functools.partial(_add_pos_dropout_kernel,
                               threshold=threshold, scale=scale)
    bits_spec = pl.BlockSpec((tile_b, tile_s, D), lambda s, b: (b, s, 0))
    return pl.pallas_call(
        kernel,
        out_shape=out_shape,
        grid=grid,
        in_specs=[x_spec, pos_spec, bits_spec],
        out_specs=out_spec,
        compiler_params=compiler_params,
    )(x, pos_arr, bits)


# ---------------------------------------------------------------------------
# Deterministic parameter init (matches nn.Embedding(max_len, d_model) ~ N(0,1))
# ---------------------------------------------------------------------------
def init_params(key, max_len, d_model, dtype=jnp.float32):
    return jax.random.normal(key, (max_len, d_model), dtype=dtype)


if __name__ == "__main__":
    B, S, D = 2, 8, 32          # batch, seq_len, d_model
    MAX_LEN = 64                # embedding-table max_len
    DROPOUT = 0.1

    key = jax.random.PRNGKey(0)
    kx, kp, kd = jax.random.split(key, 3)
    x = jax.random.normal(kx, (B, S, D), dtype=jnp.float32)
    pos_table = init_params(kp, MAX_LEN, D)

    ref = x + pos_table[:S][None, :, :]

    # --- inference-mode forward (dropout = identity), matches eval() semantics ---
    out = learned_positional_encoding_1d(x, pos_table, dropout_rate=DROPOUT,
                                         training=False)
    out = jax.block_until_ready(out)
    assert out.shape == (B, S, D)
    assert jnp.allclose(out, ref, atol=1e-6, rtol=1e-6)

    # --- training-mode forward exercising the dropout path ---
    out_train = learned_positional_encoding_1d(x, pos_table, dropout_rate=DROPOUT,
                                               training=True, rng_key=kd)
    out_train = jax.block_until_ready(out_train)

    # exact reference: same bits / threshold / scale as the kernel
    bits = jax.random.randint(kd, (B, S, D), 0, 1 << 24, dtype=jnp.int32)
    keep = bits >= int(round(DROPOUT * (1 << 24)))
    expected = jnp.where(keep, ref / (1.0 - DROPOUT), 0.0)
    assert jnp.allclose(out_train, expected, atol=1e-5, rtol=1e-5)

    print("KERNEL_OK")
</pallas_src>

<mosaic_0001>
module attributes {stable_mosaic.version = 11 : i64} {
  func.func @_add_pos_kernel(%arg0: i32, %arg1: i32, %arg2: memref<2x8x32xf32, #tpu.memory_space<vmem>>, %arg3: memref<8x32xf32, #tpu.memory_space<vmem>>, %arg4: memref<2x8x32xf32, #tpu.memory_space<vmem>>) attributes {dimension_semantics = [#tpu.dimension_semantics<parallel>, #tpu.dimension_semantics<parallel>], iteration_bounds = array<i64: 1, 1>, scalar_prefetch = 0 : i64, scratch_operands = 0 : i64, tpu.core_type = #tpu.core_type<tc>, window_params = [{transform_indices = @transform_0, window_bounds = array<i64: 2, 8, 32>}, {transform_indices = @transform_1, window_bounds = array<i64: 8, 32>}, {transform_indices = @transform_2, window_bounds = array<i64: 2, 8, 32>}]} {
    %c0 = arith.constant 0 : index
    %c0_0 = arith.constant 0 : index
    %0 = vector.load %arg3[%c0, %c0_0] : memref<8x32xf32, #tpu.memory_space<vmem>>, vector<8x32xf32>
    %c0_1 = arith.constant 0 : index
    %c0_2 = arith.constant 0 : index
    %c0_3 = arith.constant 0 : index
    %1 = vector.load %arg2[%c0_1, %c0_2, %c0_3] : memref<2x8x32xf32, #tpu.memory_space<vmem>>, vector<2x8x32xf32>
    %2 = vector.shape_cast %0 : vector<8x32xf32> to vector<1x8x32xf32>
    %3 = vector.broadcast %2 : vector<1x8x32xf32> to vector<2x8x32xf32>
    %4 = arith.addf %1, %3 : vector<2x8x32xf32>
    %c0_4 = arith.constant 0 : index
    %c0_5 = arith.constant 0 : index
    %c0_6 = arith.constant 0 : index
    %5 = vector.load %arg4[%c0_4, %c0_5, %c0_6] : memref<2x8x32xf32, #tpu.memory_space<vmem>>, vector<2x8x32xf32>
    tpu.vector_store %arg4[%c0_4, %c0_5, %c0_6], %4 {strides = array<i32>} : memref<2x8x32xf32, #tpu.memory_space<vmem>>, vector<2x8x32xf32>,
    return
  }
  func.func @transform_0(%arg0: i32, %arg1: i32) -> (i32, i32, i32) {
    %c0_i32 = arith.constant 0 : i32
    %c0_i32_0 = arith.constant 0 : i32
    return %arg1, %arg0, %c0_i32 : i32, i32, i32
  }
  func.func @transform_1(%arg0: i32, %arg1: i32) -> (i32, i32) {
    %c0_i32 = arith.constant 0 : i32
    %c0_i32_0 = arith.constant 0 : i32
    return %arg0, %c0_i32 : i32, i32
  }
  func.func @transform_2(%arg0: i32, %arg1: i32) -> (i32, i32, i32) {
    %c0_i32 = arith.constant 0 : i32
    %c0_i32_0 = arith.constant 0 : i32
    return %arg1, %arg0, %c0_i32 : i32, i32, i32
  }
}

</mosaic_0001>

<llo_original>
// kernel: tpu_custom_call.1
$region0: #{tpu_custom_call.1}
  #allocation0 [shape = 'u32[]', space=smem, size = 0x4, offset = 0x4, fixed_abs, tag = 'smem constant byte address 0x4 - core index']
  #allocation1 [shape = 'u32[144,128]{1,0:T(1,128)}', space=vmem, size = 0x12000, scoped, tag = 'internal scratch']
  %s0 = inlined_call_operand.vmem [shape: f32[2,8,32], index: 0, kind: input, shape index: {}]
  %s1 = inlined_call_operand.vmem [shape: f32[64,32], index: 1, kind: input, shape index: {}]
  %s2 = inlined_call_operand.hbm [shape: f32[2,8,32], index: 2, kind: output, shape index: {}]
  %s3 = sld [smem:[#allocation0]]
  $region18: #{tpu_custom_call.1} parent=0
    _
  %s5 = ssub.s32 1, %s3
  %s6 = scalar_select 0, %s5, %s3
  $region1: #{tpu_custom_call.1} parent=0
    #allocation2 [shape = 'u8[8192]{0}', space=vmem, size = 0x2000, scoped, tag = 'output window, operand 0, single buffered']
    #allocation3 [shape = 's32[1]{0}', space=sflag, size = 0x4, scoped, tag = 'scoped memory for tpu_custom_call.1']
    %7 = vsyncpa [#allocation3], 0
    // Predicated region
    $region2: #{tpu_custom_call.1} parent=1 // pred_check
      _
    $region3: #{tpu_custom_call.1} parent=1 // pred_check_branch
      %9 = sbr.rel (0) target = $region5
    $region4: #{tpu_custom_call.1} parent=1 // pred_region
      _
    $region5: #{tpu_custom_call.1} parent=1 // pred_fallthru
      _
    // Predicated region
    $region6: #{tpu_custom_call.1} parent=1 // pred_check
      _
    $region7: #{tpu_custom_call.1} parent=1 // pred_check_branch
      %11 = sbr.rel (0) target = $region9
    $region8: #{tpu_custom_call.1} parent=1 // pred_region
      _
    $region9: #{tpu_custom_call.1} parent=1 // pred_fallthru
      _
    %v12 = vld [vmem:[%s1] sm:$0xff]
    %v13 = vld [vmem:[%s0] sm:$0xff]
    %v14 = vld [vmem:[%s0 + $0x8] sm:$0xff]
    %v15 = vadd.f32 %v13, %v12
    %v16 = vadd.f32 %v14, %v12
    %vm17 = vcmask 261120
    %18 = vst.msk [vmem:[#allocation2] sm:$0xff] %vm17, %v15
    %19 = vst.msk [vmem:[#allocation2 + $0x8] sm:$0xff] %vm17, %v16
    // Predicated region
    $region10: #{tpu_custom_call.1} parent=1 // pred_check
      _
    $region11: #{tpu_custom_call.1} parent=1 // pred_check_branch
      %21 = sbr.rel (0) target = $region13
    $region12: #{tpu_custom_call.1} parent=1 // pred_region
      %s23 = ssub.s32 256, 256
      %24 = vsyncadd [#allocation3], %s23
      %s25 = sshll.u32 [#allocation2], 4
      %s26 = int_to_ptr.vmem [resolvable:$true] %s25
      %31 = dma.vmem_to_hbm [thread:$0]  %s26, 256, %s2, [#allocation3], 128, 128, 8
    $region13: #{tpu_custom_call.1} parent=1 // pred_fallthru
      _
    // Predicated region
    $region14: #{tpu_custom_call.1} parent=1 // pred_check
      _
    $region15: #{tpu_custom_call.1} parent=1 // pred_check_branch
      %33 = sbr.rel (0) target = $region17
    $region16: #{tpu_custom_call.1} parent=1 // pred_region
      %34 = dma.done [#allocation3], 256
    $region17: #{tpu_custom_call.1} parent=1 // pred_fallthru
      _
    %35 = vsyncpa [#allocation3], 1

</llo_original>
